<compile_context>
chip_gen: v7x
topology: tpu7x:2x2x1
jax: 0.10.0
libtpu: 0.0.40
codegen_flags: <defaults>
</compile_context>

<pallas_src>
import functools
import math

import jax
import jax.numpy as jnp
from jax.experimental import pallas as pl
from jax.experimental.pallas import tpu as pltpu


_CHUNK_BYTES_MIN = 1 * 1024 * 1024   # below this, one DMA descriptor is plenty
_MAX_CHUNKS = 4                      # concurrent DMAs for larger tensors


def _make_copy_kernel(nchunks, rows_per_chunk):
    """Build a kernel that DMA-copies the whole HBM input to the HBM output."""
    if nchunks == 1:
        def kernel(x_hbm, o_hbm, sem):
            cp = pltpu.make_async_copy(x_hbm, o_hbm, sem.at[0])
            cp.start()
            cp.wait()
        return kernel

    def kernel(x_hbm, o_hbm, sem):
        # Start all chunk DMAs first (multiple engines in flight), then wait.
        copies = []
        for c in range(nchunks):
            lo = c * rows_per_chunk
            cp = pltpu.make_async_copy(
                x_hbm.at[pl.ds(lo, rows_per_chunk)],
                o_hbm.at[pl.ds(lo, rows_per_chunk)],
                sem.at[c],
            )
            cp.start()
            copies.append(cp)
        for cp in copies:
            cp.wait()
    return kernel


def _num_chunks(shape, nbytes):
    if len(shape) == 0 or nbytes < _CHUNK_BYTES_MIN:
        return 1
    rows = shape[0]
    for c in (_MAX_CHUNKS, 2):
        if rows % c == 0:
            return c
    return 1


@functools.lru_cache(maxsize=None)
def _identity_copy_fn(shape, dtype_name):
    dtype = jnp.dtype(dtype_name)
    nbytes = dtype.itemsize * math.prod(shape)
    nchunks = _num_chunks(shape, nbytes)
    rows_per_chunk = (shape[0] // nchunks) if nchunks > 1 else 0

    kernel = _make_copy_kernel(nchunks, rows_per_chunk)
    fn = pl.pallas_call(
        kernel,
        out_shape=jax.ShapeDtypeStruct(shape, dtype),
        # Raw HBM refs on both sides: no BlockSpec tiling, no VMEM bounce.
        in_specs=[pl.BlockSpec(memory_space=pl.ANY)],
        out_specs=pl.BlockSpec(memory_space=pl.ANY),
        scratch_shapes=[pltpu.SemaphoreType.DMA((nchunks,))],
        # Pure-bandwidth op: N bytes read + N bytes written, zero flops.
        cost_estimate=pl.CostEstimate(
            flops=0, transcendentals=0, bytes_accessed=2 * nbytes),
    )
    return jax.jit(fn)


class PrintDimensionsModel:
    """JAX/Pallas equivalent of printDimensionsModel (no learnable params)."""

    def __init__(self, message):
        self.message = message

    def __call__(self, inputs):
        # Mirror torch's eager `print(self.message, inputs.shape)`.
        # (Fires at Python call time; under jit it would fire once per trace.)
        print(self.message, tuple(inputs.shape))

        if inputs.ndim == 0 or inputs.size == 0:
            # Nothing worth a DMA; identity semantics preserved.
            return inputs

        fn = _identity_copy_fn(tuple(inputs.shape), str(inputs.dtype))
        return fn(inputs)


if __name__ == "__main__":
    key = jax.random.PRNGKey(0)
    model = PrintDimensionsModel("debug shape:")

    # Small NCHW-style input consistent with the conv-helper context.
    x = jax.random.normal(key, (2, 4, 16, 16), dtype=jnp.float32)
    y = jax.block_until_ready(model(x))
    assert y.shape == x.shape
    assert y.dtype == x.dtype
    assert bool(jnp.all(y == x))

    # Odd, non-128-divisible shape: DMA copy is layout-agnostic, no fallback
    # path or masked stores needed.
    x2 = jax.random.normal(jax.random.PRNGKey(0), (3, 5, 7), dtype=jnp.float32)
    y2 = jax.block_until_ready(model(x2))
    assert y2.shape == x2.shape
    assert bool(jnp.all(y2 == x2))

    # 1 MiB tensor: exercises the multi-chunk (concurrent DMA) path.
    x3 = jax.random.normal(jax.random.PRNGKey(1), (8, 32, 32, 32), dtype=jnp.float32)
    y3 = jax.block_until_ready(model(x3))
    assert y3.shape == x3.shape
    assert bool(jnp.all(y3 == x3))

    print("KERNEL_OK")
</pallas_src>

<mosaic_0001>
module attributes {stable_mosaic.version = 11 : i64} {
  func.func @kernel(%arg0: memref<2x4x16x16xf32, #tpu.memory_space<any>>, %arg1: memref<2x4x16x16xf32, #tpu.memory_space<any>>, %arg2: memref<1x!tpu.dma_semaphore, #tpu.memory_space<semaphore_mem>>) attributes {dimension_semantics = [], scalar_prefetch = 0 : i64, scratch_operands = 1 : i64, tpu.core_type = #tpu.core_type<tc>} {
    %c0_i32 = arith.constant 0 : i32
    %0 = tpu.memref_slice %arg2[%c0_i32] : memref<1x!tpu.dma_semaphore, #tpu.memory_space<semaphore_mem>> -> memref<1x!tpu.dma_semaphore, #tpu.memory_space<semaphore_mem>>
    %1 = tpu.memref_squeeze %0 : memref<1x!tpu.dma_semaphore, #tpu.memory_space<semaphore_mem>> -> memref<!tpu.dma_semaphore, #tpu.memory_space<semaphore_mem>>
    tpu.enqueue_dma source(%arg0 : memref<2x4x16x16xf32, #tpu.memory_space<any>>) target(%arg1 : memref<2x4x16x16xf32, #tpu.memory_space<any>>) target_semaphore(%1 : memref<!tpu.dma_semaphore, #tpu.memory_space<semaphore_mem>>)
    %c0_i32_0 = arith.constant 0 : i32
    %2 = tpu.memref_slice %arg2[%c0_i32_0] : memref<1x!tpu.dma_semaphore, #tpu.memory_space<semaphore_mem>> -> memref<1x!tpu.dma_semaphore, #tpu.memory_space<semaphore_mem>>
    %3 = tpu.memref_squeeze %2 : memref<1x!tpu.dma_semaphore, #tpu.memory_space<semaphore_mem>> -> memref<!tpu.dma_semaphore, #tpu.memory_space<semaphore_mem>>
    tpu.wait_dma2 semaphore(%3 : memref<!tpu.dma_semaphore, #tpu.memory_space<semaphore_mem>>) src(%arg0 : memref<2x4x16x16xf32, #tpu.memory_space<any>>) dst(%arg1 : memref<2x4x16x16xf32, #tpu.memory_space<any>>)
    return
  }
}

</mosaic_0001>

<llo_original>
// kernel: tpu_custom_call.1
$region0: #{tpu_custom_call.1}
  #allocation0 [shape = 'u32[]', space=smem, size = 0x4, offset = 0x4, fixed_abs, tag = 'smem constant byte address 0x4 - core index']
  #allocation1 [shape = 'u32[144,128]{1,0:T(1,128)}', space=vmem, size = 0x12000, scoped, tag = 'internal scratch']
  #allocation2 [shape = 's32[1]{0}', space=sflag, size = 0x4, scoped, tag = 'scratch operand']
  #allocation3 [shape = 's32[]', space=sflag, size = 0x4, offset = 0, fixed_abs, tag = 'sflag constant byte address 0x0 - dummy sync flag']
  #allocation4 [shape = 'u32[0]{0}', space=smem, size = 0, offset = 0, fixed_abs, tag = 'smem constant byte address 0x0 - null']
  %s0 = inlined_call_operand.hbm [shape: f32[2,4,16,16], index: 0, kind: input, shape index: {}]
  %s1 = inlined_call_operand.hbm [shape: f32[2,4,16,16], index: 1, kind: output, shape index: {}]
  %s2 = sld [smem:[#allocation0]]
  $region2: #{tpu_custom_call.1} parent=0
    _
  %s4 = ssub.s32 1, %s2
  %s5 = scalar_select 0, %s4, %s2
  %s7 = sshll.u32 1, 14
  %s8 = sxor.u32 4294967295, %s7
  %s11 = sshll.u32 3, 24
  %s12 = sxor.u32 4294967295, %s11
  %s13 = sand.u32 0, %s12
  %s15 = sor.u32 %s13, 0
  %18 = dma.general %s0, 2048, %s1, [#allocation2], [#allocation3], [#allocation4], %s15, 0
  %s19 = smul.u32 2, 4
  %s20 = smul.u32 %s19, 16
  %s21 = smul.u32 %s20, 1
  %s22 = sshll.u32 %s21, 4
  %23 = dma.done [#allocation2], %s22
  %24 = vsyncmov [#allocation2]
  %s25 = vpop.sfrf %24
  %p26 = scmp.eq.s32.totalorder %s25, 0
  %p27 = pneg %p26
  %29 = shalt.err (%p27)

</llo_original>
